<compile_context>
chip_gen: v6e
topology: v6e:2x2x1
jax: 0.10.0
libtpu: 0.0.40
codegen_flags: <defaults>
</compile_context>

<pallas_src>
import jax
import jax.numpy as jnp
from jax.experimental import pallas as pl
from jax.experimental.pallas import tpu as pltpu


_VMEM_LIMIT_BYTES = 32 * 1024 * 1024      # scoped VMEM request; safe on v5e/v6e/v7x
_KV_TILE_BUDGET_BYTES = 16 * 1024 * 1024  # budget for double-buffered keys+values tiles
_MAX_BLOCK_N = 8192                       # lane cap per grid step


def _nw_kernel(c_ref, q_ref, k_ref, v_ref, o_ref):
    # c_ref: SMEM (1,)      folded scalar c = -0.5 * w^2
    # q_ref: VMEM (1, TN)   queries for this block (lane axis = query index)
    # k_ref: VMEM (m, TN)   keys, transposed: reduction axis m on sublanes
    # v_ref: VMEM (m, TN)   values, transposed
    # o_ref: VMEM (1, TN)   per-query weighted sum (lane-dense output)
    c = c_ref[0]
    q = q_ref[...]                               # (1, TN)
    k = k_ref[...]                               # (m, TN)
    v = v_ref[...]                               # (m, TN)

    d = q - k                                    # broadcast query row over m
    s = c * (d * d)                              # scores = -((q-k)*w)^2 / 2

    # numerically-stable softmax (keep the max subtraction), reduced over sublanes
    s_max = jnp.max(s, axis=0, keepdims=True)    # (1, TN)
    e = jnp.exp(s - s_max)                       # (m, TN)

    # fused normalization: weighted sum / sum, reciprocal only on TN values per block
    num = jnp.sum(e * v, axis=0, keepdims=True)  # (1, TN)
    den = jnp.sum(e, axis=0, keepdims=True)      # (1, TN)
    o_ref[...] = num * pl.reciprocal(den, approx=False)


def _pick_block_n(n, m):
    """VMEM-aware query-axis tile: a function of m, multiple of 128 lanes."""
    m_pad = ((m + 7) // 8) * 8                       # sublane padding
    per_lane = 2 * 2 * m_pad * 4                     # keys+values, double-buffered, f32
    max_lanes = max(1, _KV_TILE_BUDGET_BYTES // per_lane)
    block_n = min(n, max_lanes, _MAX_BLOCK_N)
    if block_n >= n:
        return n                                     # single full-width block
    if n >= 8 * 128:
        block_n = min(block_n, n // 8)               # >= ~8 grid steps: feeds both v7x TCs
    return max(128, (block_n // 128) * 128)


def nw_kernel_regression_t(queries, keys_t, values_t, w, *, block_n=None):
    """Preferred entry point.

    queries:  (n,)   f32
    keys_t:   (m, n) f32   -- already transposed (hoist the transpose out of any loop)
    values_t: (m, n) f32
    w:        (1,)   f32
    returns   (n,)   f32
    """
    m, n = keys_t.shape
    kT = jnp.asarray(keys_t, jnp.float32)
    vT = jnp.asarray(values_t, jnp.float32)
    q2 = jnp.asarray(queries, jnp.float32).reshape(1, n)
    wf = jnp.asarray(w, jnp.float32).reshape(())
    c = (-0.5 * wf * wf).reshape(1)              # folded scalar constant

    if block_n is None:
        block_n = _pick_block_n(n, m)
    else:
        block_n = min(int(block_n), n)
        if block_n < n:
            block_n = max(128, (block_n // 128) * 128)

    grid = (pl.cdiv(n, block_n),)

    out = pl.pallas_call(
        _nw_kernel,
        out_shape=jax.ShapeDtypeStruct((1, n), jnp.float32),
        grid_spec=pltpu.PrefetchScalarGridSpec(
            num_scalar_prefetch=0,
            grid=grid,
            in_specs=[
                pl.BlockSpec(memory_space=pltpu.MemorySpace.SMEM),  # c (folded scalar)
                pl.BlockSpec((1, block_n), lambda i: (0, i)),       # queries block
                pl.BlockSpec((m, block_n), lambda i: (0, i)),       # keys^T block
                pl.BlockSpec((m, block_n), lambda i: (0, i)),       # values^T block
            ],
            out_specs=pl.BlockSpec((1, block_n), lambda i: (0, i)),
        ),
        compiler_params=pltpu.CompilerParams(
            dimension_semantics=("parallel",),          # independent query tiles -> megacore
            vmem_limit_bytes=_VMEM_LIMIT_BYTES,
        ),
    )(c, q2, kT, vT)
    return out.reshape(-1)


def nw_kernel_regression(queries, keys, values, w, *, block_n=None):
    """Convenience shim for (n, m)-layout inputs.

    This does one transpose per call; for repeated calls (training loops) transpose the
    constant keys/values ONCE outside the loop and call `nw_kernel_regression_t` instead.
    """
    return nw_kernel_regression_t(queries, keys.T, values.T, w, block_n=block_n)


def _f(x):
    return 2.0 * jnp.sin(x) + x ** 0.8


def _reference(queries, keys, values, w):
    n, m = keys.shape
    q_b = jnp.broadcast_to(queries.reshape(n, 1), (n, m))
    scores = -(((q_b - keys) * w[0]) ** 2) / 2.0
    attn = jax.nn.softmax(scores, axis=1)
    return jnp.sum(attn * values, axis=1)


if __name__ == "__main__":
    n_train = 50

    key = jax.random.PRNGKey(0)
    k_x, k_noise, k_w = jax.random.split(key, 3)

    # Deterministic synthetic training data (mirrors the script around the module).
    x_train = jnp.sort(jax.random.uniform(k_x, (n_train,), dtype=jnp.float32) * 5.0)
    y_train = _f(x_train) + 0.5 * jax.random.normal(k_noise, (n_train,), dtype=jnp.float32)

    eye_mask = (1.0 - jnp.eye(n_train)).astype(bool)
    X_tile = jnp.tile(x_train, (n_train, 1))
    Y_tile = jnp.tile(y_train, (n_train, 1))
    keys = X_tile[eye_mask].reshape(n_train, -1)      # (50, 49)
    values = Y_tile[eye_mask].reshape(n_train, -1)    # (50, 49)
    queries = x_train                                 # (50,)

    # Deterministic parameter init (torch.rand((1,)) equivalent).
    w = jax.random.uniform(k_w, (1,), dtype=jnp.float32)

    # Transpose ONCE (hoisted, as it would be outside a training loop) and call the
    # (m, n)-layout entry point — no per-call transpose HBM round trip.
    keys_t = jnp.asarray(keys.T)                      # (49, 50)
    values_t = jnp.asarray(values.T)                  # (49, 50)

    out = nw_kernel_regression_t(queries, keys_t, values_t, w)
    out = jax.block_until_ready(out)

    ref = _reference(queries, keys, values, w)
    assert out.shape == (n_train,)
    assert jnp.allclose(out, ref, atol=1e-5, rtol=1e-5)

    # Second check: exercise the tiled grid path and the ragged tail block on hardware
    # (n % block_n != 0 -> masked writeback of the partial output block).
    n2, m2 = 300, 49
    k_q2, k_k2, k_v2 = jax.random.split(jax.random.PRNGKey(1), 3)
    q2 = jax.random.uniform(k_q2, (n2,), dtype=jnp.float32) * 5.0
    keys2 = jax.random.uniform(k_k2, (n2, m2), dtype=jnp.float32) * 5.0
    vals2 = jax.random.normal(k_v2, (n2, m2), dtype=jnp.float32)
    out2 = nw_kernel_regression_t(q2, keys2.T, vals2.T, w, block_n=128)
    out2 = jax.block_until_ready(out2)
    ref2 = _reference(q2, keys2, vals2, w)
    assert out2.shape == (n2,)
    assert jnp.allclose(out2, ref2, atol=1e-5, rtol=1e-5)

    print("KERNEL_OK")
</pallas_src>

<mosaic_0001>
module attributes {stable_mosaic.version = 11 : i64} {
  func.func @_nw_kernel(%arg0: i32, %arg1: memref<1xf32, #tpu.memory_space<smem>>, %arg2: memref<1x50xf32, #tpu.memory_space<vmem>>, %arg3: memref<49x50xf32, #tpu.memory_space<vmem>>, %arg4: memref<49x50xf32, #tpu.memory_space<vmem>>, %arg5: memref<1x50xf32, #tpu.memory_space<vmem>>) attributes {dimension_semantics = [#tpu.dimension_semantics<parallel>], iteration_bounds = array<i64: 1>, scalar_prefetch = 0 : i64, scratch_operands = 0 : i64, tpu.core_type = #tpu.core_type<tc>, window_params = [{transform_indices = @transform_0, window_bounds = array<i64: 1>}, {transform_indices = @transform_1, window_bounds = array<i64: 1, 50>}, {transform_indices = @transform_2, window_bounds = array<i64: 49, 50>}, {transform_indices = @transform_3, window_bounds = array<i64: 49, 50>}, {transform_indices = @transform_4, window_bounds = array<i64: 1, 50>}]} {
    %c0 = arith.constant 0 : index
    %0 = memref.load %arg1[%c0] : memref<1xf32, #tpu.memory_space<smem>>
    %c0_0 = arith.constant 0 : index
    %c0_1 = arith.constant 0 : index
    %1 = vector.load %arg2[%c0_0, %c0_1] : memref<1x50xf32, #tpu.memory_space<vmem>>, vector<1x50xf32>
    %c0_2 = arith.constant 0 : index
    %c0_3 = arith.constant 0 : index
    %2 = vector.load %arg3[%c0_2, %c0_3] : memref<49x50xf32, #tpu.memory_space<vmem>>, vector<49x50xf32>
    %c0_4 = arith.constant 0 : index
    %c0_5 = arith.constant 0 : index
    %3 = vector.load %arg4[%c0_4, %c0_5] : memref<49x50xf32, #tpu.memory_space<vmem>>, vector<49x50xf32>
    %4 = vector.broadcast %1 : vector<1x50xf32> to vector<49x50xf32>
    %5 = arith.subf %4, %2 : vector<49x50xf32>
    %6 = arith.mulf %5, %5 : vector<49x50xf32>
    %7 = vector.broadcast %0 : f32 to vector<49x50xf32>
    %8 = arith.mulf %7, %6 : vector<49x50xf32>
    %cst = arith.constant dense<0xFF800000> : vector<50xf32>
    %9 = vector.multi_reduction <maximumf>, %8, %cst [0] : vector<49x50xf32> to vector<50xf32>
    %10 = vector.shape_cast %9 : vector<50xf32> to vector<1x50xf32>
    %11 = vector.broadcast %10 : vector<1x50xf32> to vector<49x50xf32>
    %12 = arith.subf %8, %11 : vector<49x50xf32>
    %13 = math.exp %12 : vector<49x50xf32>
    %14 = arith.mulf %13, %3 : vector<49x50xf32>
    %cst_6 = arith.constant dense<0.000000e+00> : vector<50xf32>
    %15 = vector.multi_reduction <add>, %14, %cst_6 [0] : vector<49x50xf32> to vector<50xf32>
    %16 = vector.shape_cast %15 : vector<50xf32> to vector<1x50xf32>
    %cst_7 = arith.constant dense<0.000000e+00> : vector<50xf32>
    %17 = vector.multi_reduction <add>, %13, %cst_7 [0] : vector<49x50xf32> to vector<50xf32>
    %18 = vector.shape_cast %17 : vector<50xf32> to vector<1x50xf32>
    %19 = tpu.reciprocal %18 : vector<1x50xf32> -> vector<1x50xf32>
    %20 = arith.mulf %16, %19 : vector<1x50xf32>
    %c0_8 = arith.constant 0 : index
    %c0_9 = arith.constant 0 : index
    %21 = vector.load %arg5[%c0_8, %c0_9] : memref<1x50xf32, #tpu.memory_space<vmem>>, vector<1x50xf32>
    tpu.vector_store %arg5[%c0_8, %c0_9], %20 {strides = array<i32>} : memref<1x50xf32, #tpu.memory_space<vmem>>, vector<1x50xf32>,
    return
  }
  func.func @transform_0(%arg0: i32) -> i32 {
    %c0_i32 = arith.constant 0 : i32
    %c0_i32_0 = arith.constant 0 : i32
    return %c0_i32 : i32
  }
  func.func @transform_1(%arg0: i32) -> (i32, i32) {
    %c0_i32 = arith.constant 0 : i32
    %c0_i32_0 = arith.constant 0 : i32
    return %c0_i32, %arg0 : i32, i32
  }
  func.func @transform_2(%arg0: i32) -> (i32, i32) {
    %c0_i32 = arith.constant 0 : i32
    %c0_i32_0 = arith.constant 0 : i32
    return %c0_i32, %arg0 : i32, i32
  }
  func.func @transform_3(%arg0: i32) -> (i32, i32) {
    %c0_i32 = arith.constant 0 : i32
    %c0_i32_0 = arith.constant 0 : i32
    return %c0_i32, %arg0 : i32, i32
  }
  func.func @transform_4(%arg0: i32) -> (i32, i32) {
    %c0_i32 = arith.constant 0 : i32
    %c0_i32_0 = arith.constant 0 : i32
    return %c0_i32, %arg0 : i32, i32
  }
}

</mosaic_0001>

<llo_original>
// kernel: tpu_custom_call.1
$region0: #{tpu_custom_call.1}
  #allocation0 [shape = 'u32[]', space=smem, size = 0x4, offset = 0x4, fixed_abs, tag = 'smem constant byte address 0x4 - core index']
  #allocation1 [shape = 'u32[144,128]{1,0:T(1,128)}', space=vmem, size = 0x12000, scoped, tag = 'internal scratch']
  #allocation2 [shape = 'f32[1]{0:T(128)S(6)}', space=smem, size = 0x200, scoped, tag = 'scoped memory for tpu_custom_call.1']
  %s0 = inlined_call_operand.<no memory space> [shape: f32[1], index: 0, kind: input, shape index: {}]
  %s1 = inlined_call_operand.vmem [shape: f32[1,50], index: 1, kind: input, shape index: {}]
  %s2 = inlined_call_operand.hbm [shape: f32[49,50], index: 2, kind: input, shape index: {}]
  %s3 = inlined_call_operand.hbm [shape: f32[49,50], index: 3, kind: input, shape index: {}]
  %s4 = inlined_call_operand.hbm [shape: f32[1,50], index: 4, kind: output, shape index: {}]
  %s5 = sld [smem:[#allocation0]]
  $region34: #{tpu_custom_call.1} parent=0
    _
  %s7 = ssub.s32 1, %s5
  %s8 = scalar_select 0, %s7, %s5
  %9 = sst [smem:[#allocation2]] %s0
  $region1: #{tpu_custom_call.1} parent=0
    #allocation3 [shape = 'u8[28672]{0}', space=vmem, size = 0x7000, scoped, tag = 'input window, operand 2, single buffered']
    #allocation4 [shape = 's32[1]{0}', space=sflag, size = 0x4, scoped, tag = 'scoped memory for tpu_custom_call.1']
    #allocation5 [shape = 's32[1]{0}', space=sflag, size = 0x4, scoped, tag = 'scoped memory for tpu_custom_call.1']
    #allocation6 [shape = 'u8[28672]{0}', space=vmem, size = 0x7000, scoped, tag = 'input window, operand 3, single buffered']
    #allocation7 [shape = 's32[1]{0}', space=sflag, size = 0x4, scoped, tag = 'scoped memory for tpu_custom_call.1']
    #allocation8 [shape = 'u8[512]{0}', space=vmem, size = 0x400, scoped, tag = 'output window, operand 0, single buffered']
    %10 = vsyncpa [#allocation4], 0
    %11 = vsyncpa [#allocation7], 0
    %12 = vsyncpa [#allocation5], 0
    // Predicated region
    $region2: #{tpu_custom_call.1} parent=1 // pred_check
      _
    $region3: #{tpu_custom_call.1} parent=1 // pred_check_branch
      %14 = sbr.rel (0) target = $region5
    $region4: #{tpu_custom_call.1} parent=1 // pred_region
      _
    $region5: #{tpu_custom_call.1} parent=1 // pred_fallthru
      _
    // Predicated region
    $region6: #{tpu_custom_call.1} parent=1 // pred_check
      _
    $region7: #{tpu_custom_call.1} parent=1 // pred_check_branch
      %16 = sbr.rel (0) target = $region9
    $region8: #{tpu_custom_call.1} parent=1 // pred_region
      _
    $region9: #{tpu_custom_call.1} parent=1 // pred_fallthru
      _
    // Predicated region
    $region10: #{tpu_custom_call.1} parent=1 // pred_check
      _
    $region11: #{tpu_custom_call.1} parent=1 // pred_check_branch
      %18 = sbr.rel (0) target = $region13
    $region12: #{tpu_custom_call.1} parent=1 // pred_region
      %s20 = ssub.s32 896, 896
      %21 = vsyncadd [#allocation4], %s20
      %s22 = sshll.u32 [#allocation3], 4
      %s23 = int_to_ptr.vmem [resolvable:$true] %s22
      %28 = dma.hbm_to_vmem [thread:$0]  %s2, 896, %s23, [#allocation4], 128, 128, 8
    $region13: #{tpu_custom_call.1} parent=1 // pred_fallthru
      _
    // Predicated region
    $region14: #{tpu_custom_call.1} parent=1 // pred_check
      _
    $region15: #{tpu_custom_call.1} parent=1 // pred_check_branch
      %30 = sbr.rel (0) target = $region17
    $region16: #{tpu_custom_call.1} parent=1 // pred_region
      %s32 = ssub.s32 896, 896
      %33 = vsyncadd [#allocation7], %s32
      %s34 = sshll.u32 [#allocation6], 4
      %s35 = int_to_ptr.vmem [resolvable:$true] %s34
      %40 = dma.hbm_to_vmem [thread:$0]  %s3, 896, %s35, [#allocation7], 128, 128, 8
    $region17: #{tpu_custom_call.1} parent=1 // pred_fallthru
      _
    // Predicated region
    $region18: #{tpu_custom_call.1} parent=1 // pred_check
      _
    $region19: #{tpu_custom_call.1} parent=1 // pred_check_branch
      %42 = sbr.rel (0) target = $region21
    $region20: #{tpu_custom_call.1} parent=1 // pred_region
      %43 = dma.done [#allocation4], 896
    $region21: #{tpu_custom_call.1} parent=1 // pred_fallthru
      _
    // Predicated region
    $region22: #{tpu_custom_call.1} parent=1 // pred_check
      _
    $region23: #{tpu_custom_call.1} parent=1 // pred_check_branch
      %45 = sbr.rel (0) target = $region25
    $region24: #{tpu_custom_call.1} parent=1 // pred_region
      %46 = dma.done [#allocation7], 896
    $region25: #{tpu_custom_call.1} parent=1 // pred_fallthru
      _
    %s47 = sld [smem:[#allocation2]]
    %v48 = vld [vmem:[%s1] sm:$0x1]
    %v49 = vld [vmem:[#allocation3] sm:$0xff]
    %v50 = vld [vmem:[#allocation3 + $0x8] sm:$0xff]
    %v51 = vld [vmem:[#allocation3 + $0x10] sm:$0xff]
    %v52 = vld [vmem:[#allocation3 + $0x18] sm:$0xff]
    %v53 = vld [vmem:[#allocation3 + $0x20] sm:$0xff]
    %v54 = vld [vmem:[#allocation3 + $0x28] sm:$0xff]
    %v55 = vld [vmem:[#allocation3 + $0x30] sm:$0x1]
    %v56 = vld [vmem:[#allocation6] sm:$0xff]
    %v57 = vld [vmem:[#allocation6 + $0x8] sm:$0xff]
    %v58 = vld [vmem:[#allocation6 + $0x10] sm:$0xff]
    %v59 = vld [vmem:[#allocation6 + $0x18] sm:$0xff]
    %v60 = vld [vmem:[#allocation6 + $0x20] sm:$0xff]
    %v61 = vld [vmem:[#allocation6 + $0x28] sm:$0xff]
    %v62 = vld [vmem:[#allocation6 + $0x30] sm:$0x1]
    %v64 = vlaneseq
    %v65 = vshrl.u32 %v64, 7
    %v66 = vsub.s32 0, %v65
    %v67 = vrot.slane %v48, %v66
    %v69 = vsub.f32 %v67, %v49
    %v70 = vsub.f32 %v67, %v50
    %v71 = vsub.f32 %v67, %v51
    %v72 = vsub.f32 %v67, %v52
    %v73 = vsub.f32 %v67, %v53
    %v74 = vsub.f32 %v67, %v54
    %v75 = vsub.f32 %v67, %v55
    %v76 = vmul.f32 %v69, %v69
    %v77 = vmul.f32 %v70, %v70
    %v78 = vmul.f32 %v71, %v71
    %v79 = vmul.f32 %v72, %v72
    %v80 = vmul.f32 %v73, %v73
    %v81 = vmul.f32 %v74, %v74
    %v82 = vmul.f32 %v75, %v75
    %v83 = vstv %s47
    %v84 = vmul.f32 %v83, %v76
    %v85 = vmul.f32 %v83, %v77
    %v86 = vmul.f32 %v83, %v78
    %v87 = vmul.f32 %v83, %v79
    %v88 = vmul.f32 %v83, %v80
    %v89 = vmul.f32 %v83, %v81
    %v90 = vmul.f32 %v83, %v82
    %vm91 = vcmask 408576
    %v92 = vsel %vm91, %v84, -inf
    %v93 = vsel %vm91, %v85, -inf
    %v94 = vsel %vm91, %v86, -inf
    %v95 = vsel %vm91, %v87, -inf
    %v96 = vsel %vm91, %v88, -inf
    %v97 = vmax.f32 %v92, %v96
    %v98 = vsel %vm91, %v89, -inf
    %v99 = vmax.f32 %v93, %v98
    %vm100 = vcmask 401408
    %v101 = vsel %vm100, %v90, -inf
    %v102 = vmax.f32 %v94, %v101
    %v103 = vmax.f32 %v97, %v99
    %v104 = vmax.f32 %v102, %v95
    %v105 = vmax.f32 %v103, %v104
    %v106 = vrot.slane %v105, 4
    %v107 = vmax.f32 %v105, %v106
    %v108 = vrot.slane %v107, 2
    %v109 = vmax.f32 %v107, %v108
    %v110 = vrot.slane %v109, 1
    %v111 = vmax.f32 %v109, %v110
    %v112 = vsub.f32 %v84, %v111
    %v113 = vsub.f32 %v85, %v111
    %v114 = vsub.f32 %v86, %v111
    %v115 = vsub.f32 %v87, %v111
    %v116 = vsub.f32 %v88, %v111
    %v117 = vsub.f32 %v89, %v111
    %v118 = vsub.f32 %v90, %v111
    %v119 = vmul.f32 %v112, 1.442695
    %v120 = vpow.pop %v119
    %v121 = vmul.f32 %v113, 1.442695
    %v122 = vpow.pop %v121
    %v123 = vmul.f32 %v114, 1.442695
    %v124 = vpow.pop %v123
    %v125 = vmul.f32 %v115, 1.442695
    %v126 = vpow.pop %v125
    %v127 = vmul.f32 %v116, 1.442695
    %v128 = vpow.pop %v127
    %v129 = vmul.f32 %v117, 1.442695
    %v130 = vpow.pop %v129
    %v131 = vmul.f32 %v118, 1.442695
    %v132 = vpow.pop %v131
    %v133 = vmul.f32 %v120, %v56
    %v134 = vmul.f32 %v122, %v57
    %v135 = vmul.f32 %v124, %v58
    %v136 = vmul.f32 %v126, %v59
    %v137 = vmul.f32 %v128, %v60
    %v138 = vmul.f32 %v130, %v61
    %v139 = vmul.f32 %v132, %v62
    %v140 = vsel %vm91, %v133, 0.0
    %v141 = vsel %vm91, %v134, 0.0
    %v142 = vadd.f32 %v140, %v141
    %v143 = vsel %vm91, %v135, 0.0
    %v144 = vadd.f32 %v142, %v143
    %v145 = vsel %vm91, %v136, 0.0
    %v146 = vadd.f32 %v144, %v145
    %v147 = vsel %vm91, %v137, 0.0
    %v148 = vadd.f32 %v146, %v147
    %v149 = vsel %vm91, %v138, 0.0
    %v150 = vadd.f32 %v148, %v149
    %v151 = vsel %vm100, %v139, 0.0
    %v152 = vadd.f32 %v150, %v151
    %v153 = vrot.slane %v152, 4
    %v154 = vadd.f32 %v152, %v153
    %v155 = vrot.slane %v154, 2
    %v156 = vadd.f32 %v154, %v155
    %v157 = vrot.slane %v156, 1
    %v158 = vadd.f32 %v156, %v157
    %v159 = vsel %vm91, %v120, 0.0
    %v160 = vsel %vm91, %v122, 0.0
    %v161 = vadd.f32 %v159, %v160
    %v162 = vsel %vm91, %v124, 0.0
    %v163 = vadd.f32 %v161, %v162
    %v164 = vsel %vm91, %v126, 0.0
    %v165 = vadd.f32 %v163, %v164
    %v166 = vsel %vm91, %v128, 0.0
    %v167 = vadd.f32 %v165, %v166
    %v168 = vsel %vm91, %v130, 0.0
    %v169 = vadd.f32 %v167, %v168
    %v170 = vsel %vm100, %v132, 0.0
    %v171 = vadd.f32 %v169, %v170
    %v172 = vrot.slane %v171, 4
    %v173 = vadd.f32 %v171, %v172
    %v174 = vrot.slane %v173, 2
    %v175 = vadd.f32 %v173, %v174
    %v176 = vrot.slane %v175, 1
    %v177 = vadd.f32 %v175, %v176
    %v178 = vrcp.pop %v177
    %v179 = vmul.f32 %v158, %v178
    %180 = vst.msk [vmem:[#allocation8] sm:$0x1] %vm100, %v179
    // Predicated region
    $region26: #{tpu_custom_call.1} parent=1 // pred_check
      _
    $region27: #{tpu_custom_call.1} parent=1 // pred_check_branch
      %182 = sbr.rel (0) target = $region29
    $region28: #{tpu_custom_call.1} parent=1 // pred_region
      %s184 = ssub.s32 16, 16
      %185 = vsyncadd [#allocation5], %s184
      %s187 = sshll.u32 [#allocation8], 4
      %s188 = int_to_ptr.vmem [resolvable:$true] %s187
      %190 = dma.vmem_to_hbm [thread:$0]  %s188, 16, %s4, [#allocation5]
    $region29: #{tpu_custom_call.1} parent=1 // pred_fallthru
      _
    // Predicated region
    $region30: #{tpu_custom_call.1} parent=1 // pred_check
      _
    $region31: #{tpu_custom_call.1} parent=1 // pred_check_branch
      %192 = sbr.rel (0) target = $region33
    $region32: #{tpu_custom_call.1} parent=1 // pred_region
      %193 = dma.done [#allocation5], 16
    $region33: #{tpu_custom_call.1} parent=1 // pred_fallthru
      _
    %194 = vsyncpa [#allocation4], 1
    %195 = vsyncpa [#allocation7], 1
    %196 = vsyncpa [#allocation5], 1

</llo_original>
